<compile_context>
chip_gen: v7x
topology: tpu7x:2x2x1
jax: 0.10.0
libtpu: 0.0.40
codegen_flags: <defaults>
</compile_context>

<pallas_src>
import functools

import jax
import jax.numpy as jnp
import numpy as np
from jax.experimental import pallas as pl
from jax.experimental.pallas import tpu as pltpu


# ----------------------------- kernel helpers ------------------------------


def _maxpool_3x3x3_same(x, mask_bool, *, s, w, hw):
    """Separable 3x3x3 / stride-1 'same' max pool with zero padding.

    x: (Cin, S) f32.  mask_bool: (6, S) bool, rows = (w>0, w<W-1, h>0, h<H-1,
    d>0, d<D-1).  pltpu.roll follows jnp.roll semantics, so roll(x, +shift)
    brings the neighbour at s-shift and roll(x, S-shift) the one at s+shift;
    masked (out-of-bounds) neighbours contribute the pad value 0.
    """
    cur = x
    for i, shift in enumerate((1, w, hw)):          # W pass, H pass, D pass
        lo = jnp.where(mask_bool[2 * i:2 * i + 1],
                       pltpu.roll(cur, shift, axis=1), 0.0)
        hi = jnp.where(mask_bool[2 * i + 1:2 * i + 2],
                       pltpu.roll(cur, s - shift, axis=1), 0.0)
        cur = jnp.maximum(cur, jnp.maximum(lo, hi))
    return cur


def _se_core(x, w1, b, w2, *, inv_s):
    """conv1x1x1(+folded BN) -> ReLU -> global mean -> conv1x1x1 -> sigmoid gate."""
    h = jnp.dot(w1, x, preferred_element_type=jnp.float32)      # (Cout, S)  MXU
    r = jnp.maximum(h + b, 0.0)                                  # ReLU
    avg = jnp.sum(r, axis=1, keepdims=True) * inv_s              # (Cout, 1)  XLU
    g = jnp.dot(w2, avg, preferred_element_type=jnp.float32)     # (Cout, 1)  MXU
    return r * jax.nn.sigmoid(g)                                 # gated output


# ------------------------------ Pallas kernels ------------------------------


def _inception_kernel_maxpool(mask_ref, x_ref, w1_ref, b_ref, w2_ref, o_ref,
                              *, s, w, hw, nb, inv_s):
    # Hoist weights / bias / masks: loaded once per grid step, reused for all
    # nb batch elements handled by this step.
    w1 = w1_ref[...]
    b = b_ref[...]
    w2 = w2_ref[...]
    mask_bool = mask_ref[...] > 0.5
    for n in range(nb):
        x = x_ref[n].astype(jnp.float32)                         # (Cin, S)
        mp = _maxpool_3x3x3_same(x, mask_bool, s=s, w=w, hw=hw)
        o_ref[n] = _se_core(mp, w1, b, w2, inv_s=inv_s).astype(o_ref.dtype)


def _inception_kernel_nopool(x_ref, w1_ref, b_ref, w2_ref, o_ref, *, nb, inv_s):
    w1 = w1_ref[...]
    b = b_ref[...]
    w2 = w2_ref[...]
    for n in range(nb):
        x = x_ref[n].astype(jnp.float32)
        o_ref[n] = _se_core(x, w1, b, w2, inv_s=inv_s).astype(o_ref.dtype)


# ------------------------------ host wrapper -------------------------------


def _default_batch_block(n):
    """Batch elements per grid step.

    Single-TC chips (v5e/v6e): fold the whole batch into one grid step (pay the
    ~0.35 us per-step overhead once, fill sublanes).  Multi-TC chips (v7x
    megacore) or unknown: one element per step so ("parallel",) shards the
    batch across TensorCores.
    """
    try:
        kind = jax.devices()[0].device_kind.lower()
    except Exception:  # pragma: no cover - be conservative
        return 1
    single_tc = any(t in kind for t in
                    ("v5e", "v5 lite", "v5lite", "v6e", "v6 lite", "v6lite"))
    return n if single_tc else 1


def inception_b0b3_forward(x_ncdhw, params, pool_shape, include_maxpool,
                           *, eps=1e-5, batch_block=None):
    N, Cin, D, H, W = x_ncdhw.shape
    # Kernel implements the UVQ use case where the avgpool kernel == spatial
    # dims (global average), matching the module's repeat-back-to-full-size.
    assert tuple(pool_shape) == (D, H, W), "avgpool kernel must equal spatial dims"
    Cout = params["conv1_w"].shape[0]
    S = D * H * W
    HW = H * W

    if batch_block is None:
        batch_block = _default_batch_block(N)
    assert N % batch_block == 0
    grid_n = N // batch_block

    # Channel-first, spatially flattened: free reshape, zero transposes.
    xs = x_ncdhw.reshape(N, Cin, S)

    # Fold BatchNorm (inference running stats) into conv1 weight / bias.
    scale = (params["gamma"] / jnp.sqrt(params["var"] + eps)).astype(jnp.float32)
    w1 = params["conv1_w"].reshape(Cout, Cin).astype(jnp.float32)
    w1f = w1 * scale[:, None]                                           # (Cout, Cin)
    bias = (params["beta"] - params["mean"] * scale).astype(jnp.float32).reshape(Cout, 1)
    w2 = params["conv2_w"].reshape(Cout, Cout).astype(jnp.float32)      # (Cout, Cout)

    args, in_specs = [], []
    if include_maxpool:
        s_idx = jnp.arange(S, dtype=jnp.int32)
        w_i = s_idx % W
        h_i = (s_idx // W) % H
        d_i = s_idx // HW
        masks = jnp.stack([w_i > 0, w_i < W - 1,
                           h_i > 0, h_i < H - 1,
                           d_i > 0, d_i < D - 1]).astype(jnp.float32)   # (6, S)
        args.append(masks)
        in_specs.append(pl.BlockSpec((6, S), lambda i: (0, 0)))
        kernel = functools.partial(_inception_kernel_maxpool, s=S, w=W, hw=HW,
                                   nb=batch_block, inv_s=1.0 / S)
    else:
        kernel = functools.partial(_inception_kernel_nopool,
                                   nb=batch_block, inv_s=1.0 / S)

    args += [xs, w1f, bias, w2]
    in_specs += [
        pl.BlockSpec((batch_block, Cin, S), lambda i: (i, 0, 0)),
        pl.BlockSpec((Cout, Cin), lambda i: (0, 0)),
        pl.BlockSpec((Cout, 1), lambda i: (0, 0)),
        pl.BlockSpec((Cout, Cout), lambda i: (0, 0)),
    ]

    y = pl.pallas_call(
        kernel,
        out_shape=jax.ShapeDtypeStruct((N, Cout, S), x_ncdhw.dtype),
        grid=(grid_n,),
        in_specs=in_specs,
        out_specs=pl.BlockSpec((batch_block, Cout, S), lambda i: (i, 0, 0)),
        compiler_params=pltpu.CompilerParams(
            dimension_semantics=("parallel",)),
    )(*args)

    return y.reshape(N, Cout, D, H, W)   # free reshape, already NCDHW order


# --------------------------- pure-JAX reference ----------------------------


def inception_b0b3_reference(x, params, pool_shape, include_maxpool, *, eps=1e-5):
    N, Cin, D, H, W = x.shape
    Cout = params["conv1_w"].shape[0]
    if include_maxpool:
        xp = jnp.pad(x, ((0, 0), (0, 0), (1, 1), (1, 1), (1, 1)))
        x = jax.lax.reduce_window(xp, -jnp.inf, jax.lax.max,
                                  (1, 1, 3, 3, 3), (1, 1, 1, 1, 1), "VALID")

    def bc(p):  # (Cout,) -> (1, Cout, 1, 1, 1)
        return p.reshape(1, Cout, 1, 1, 1)

    w1 = params["conv1_w"].reshape(Cout, Cin)
    h = jnp.einsum("ncdhw,oc->nodhw", x, w1)
    h = (h - bc(params["mean"])) / jnp.sqrt(bc(params["var"]) + eps) \
        * bc(params["gamma"]) + bc(params["beta"])
    r = jnp.maximum(h, 0.0)
    avg = jnp.mean(r, axis=(2, 3, 4), keepdims=True)
    w2 = params["conv2_w"].reshape(Cout, Cout)
    g = jnp.einsum("ncdhw,oc->nodhw", avg, w2)
    return r * jax.nn.sigmoid(g)


# ----------------------------------- main -----------------------------------


if __name__ == "__main__":
    N, Cin, Cout = 2, 4, 8
    D, H, W = 4, 8, 8
    pool_shape = (D, H, W)

    key = jax.random.PRNGKey(0)
    kx, k1, k2, k3, k4, k5, k6 = jax.random.split(key, 7)

    x = jax.random.normal(kx, (N, Cin, D, H, W), jnp.float32)
    params = {
        # conv3d_1 weight (Cout, Cin, 1, 1, 1), conv3d_2 weight (Cout, Cout, 1, 1, 1)
        "conv1_w": 0.2 * jax.random.normal(k1, (Cout, Cin, 1, 1, 1), jnp.float32),
        "conv2_w": 0.2 * jax.random.normal(k2, (Cout, Cout, 1, 1, 1), jnp.float32),
        # BatchNorm3d parameters / running stats (inference mode)
        "gamma": 1.0 + 0.1 * jax.random.normal(k3, (Cout,), jnp.float32),
        "beta": 0.1 * jax.random.normal(k4, (Cout,), jnp.float32),
        "mean": 0.1 * jax.random.normal(k5, (Cout,), jnp.float32),
        "var": 0.5 + jnp.abs(jax.random.normal(k6, (Cout,), jnp.float32)),
    }

    # Tolerances sized for MXU default-precision f32 matmuls (bf16 passes);
    # structural bugs (wrong neighbour / mask / BN fold) are O(0.1-1).
    rtol, atol = 2e-2, 1e-2

    for include_maxpool in (True, False):
        ref = jax.block_until_ready(
            inception_b0b3_reference(x, params, pool_shape, include_maxpool))
        # Exercise both grid strategies (per-batch parallel grid and the
        # fold-batch-into-one-step path) plus the device-default heuristic.
        for bb in (1, N, None):
            out = jax.block_until_ready(
                inception_b0b3_forward(x, params, pool_shape, include_maxpool,
                                       batch_block=bb))
            assert out.shape == (N, Cout, D, H, W), out.shape
            np.testing.assert_allclose(np.asarray(out), np.asarray(ref),
                                       rtol=rtol, atol=atol)

    print("KERNEL_OK")
</pallas_src>

<mosaic_0001>
module attributes {stable_mosaic.version = 11 : i64} {
  func.func @_inception_kernel_maxpool(%arg0: i32, %arg1: memref<6x256xf32, #tpu.memory_space<vmem>>, %arg2: memref<1x4x256xf32, #tpu.memory_space<vmem>>, %arg3: memref<8x4xf32, #tpu.memory_space<vmem>>, %arg4: memref<8x1xf32, #tpu.memory_space<vmem>>, %arg5: memref<8x8xf32, #tpu.memory_space<vmem>>, %arg6: memref<1x8x256xf32, #tpu.memory_space<vmem>>) attributes {dimension_semantics = [#tpu.dimension_semantics<parallel>], iteration_bounds = array<i64: 2>, scalar_prefetch = 0 : i64, scratch_operands = 0 : i64, tpu.core_type = #tpu.core_type<tc>, window_params = [{pipeline_mode = #tpu.pipeline_mode<synchronous>, transform_indices = @transform_0, window_bounds = array<i64: 6, 256>}, {transform_indices = @transform_1, window_bounds = array<i64: 1, 4, 256>}, {pipeline_mode = #tpu.pipeline_mode<synchronous>, transform_indices = @transform_2, window_bounds = array<i64: 8, 4>}, {pipeline_mode = #tpu.pipeline_mode<synchronous>, transform_indices = @transform_3, window_bounds = array<i64: 8, 1>}, {pipeline_mode = #tpu.pipeline_mode<synchronous>, transform_indices = @transform_4, window_bounds = array<i64: 8, 8>}, {transform_indices = @transform_5, window_bounds = array<i64: 1, 8, 256>}]} {
    %c0 = arith.constant 0 : index
    %c0_0 = arith.constant 0 : index
    %0 = vector.load %arg3[%c0, %c0_0] : memref<8x4xf32, #tpu.memory_space<vmem>>, vector<8x4xf32>
    %c0_1 = arith.constant 0 : index
    %c0_2 = arith.constant 0 : index
    %1 = vector.load %arg4[%c0_1, %c0_2] : memref<8x1xf32, #tpu.memory_space<vmem>>, vector<8x1xf32>
    %c0_3 = arith.constant 0 : index
    %c0_4 = arith.constant 0 : index
    %2 = vector.load %arg5[%c0_3, %c0_4] : memref<8x8xf32, #tpu.memory_space<vmem>>, vector<8x8xf32>
    %c0_5 = arith.constant 0 : index
    %c0_6 = arith.constant 0 : index
    %3 = vector.load %arg1[%c0_5, %c0_6] : memref<6x256xf32, #tpu.memory_space<vmem>>, vector<6x256xf32>
    %cst = arith.constant 5.000000e-01 : f32
    %4 = vector.broadcast %cst : f32 to vector<6x256xf32>
    %5 = arith.cmpf ogt, %3, %4 : vector<6x256xf32>
    %c0_7 = arith.constant 0 : index
    %c0_8 = arith.constant 0 : index
    %c0_9 = arith.constant 0 : index
    %6 = vector.load %arg2[%c0_7, %c0_8, %c0_9] : memref<1x4x256xf32, #tpu.memory_space<vmem>>, vector<1x4x256xf32>
    %7 = vector.shape_cast %6 : vector<1x4x256xf32> to vector<4x256xf32>
    %8 = vector.extract_strided_slice %5 {offsets = [0, 0], sizes = [1, 256], strides = [1, 1]} : vector<6x256xi1> to vector<1x256xi1>
    %c1_i32 = arith.constant 1 : i32
    %9 = tpu.dynamic_rotate %7 by %c1_i32 dim 1 : vector<4x256xf32>, i32 -> vector<4x256xf32>
    %cst_10 = arith.constant 0.000000e+00 : f32
    %10 = vector.shape_cast %8 : vector<1x256xi1> to vector<1x256xi1>
    %11 = vector.broadcast %10 : vector<1x256xi1> to vector<4x256xi1>
    %12 = vector.broadcast %cst_10 : f32 to vector<4x256xf32>
    %13 = arith.select %11, %9, %12 : vector<4x256xi1>, vector<4x256xf32>
    %14 = vector.extract_strided_slice %5 {offsets = [1, 0], sizes = [1, 256], strides = [1, 1]} : vector<6x256xi1> to vector<1x256xi1>
    %c255_i32 = arith.constant 255 : i32
    %15 = tpu.dynamic_rotate %7 by %c255_i32 dim 1 : vector<4x256xf32>, i32 -> vector<4x256xf32>
    %cst_11 = arith.constant 0.000000e+00 : f32
    %16 = vector.shape_cast %14 : vector<1x256xi1> to vector<1x256xi1>
    %17 = vector.broadcast %16 : vector<1x256xi1> to vector<4x256xi1>
    %18 = vector.broadcast %cst_11 : f32 to vector<4x256xf32>
    %19 = arith.select %17, %15, %18 : vector<4x256xi1>, vector<4x256xf32>
    %20 = arith.maximumf %13, %19 : vector<4x256xf32>
    %21 = arith.maximumf %7, %20 : vector<4x256xf32>
    %22 = vector.extract_strided_slice %5 {offsets = [2, 0], sizes = [1, 256], strides = [1, 1]} : vector<6x256xi1> to vector<1x256xi1>
    %c8_i32 = arith.constant 8 : i32
    %23 = tpu.dynamic_rotate %21 by %c8_i32 dim 1 : vector<4x256xf32>, i32 -> vector<4x256xf32>
    %cst_12 = arith.constant 0.000000e+00 : f32
    %24 = vector.shape_cast %22 : vector<1x256xi1> to vector<1x256xi1>
    %25 = vector.broadcast %24 : vector<1x256xi1> to vector<4x256xi1>
    %26 = vector.broadcast %cst_12 : f32 to vector<4x256xf32>
    %27 = arith.select %25, %23, %26 : vector<4x256xi1>, vector<4x256xf32>
    %28 = vector.extract_strided_slice %5 {offsets = [3, 0], sizes = [1, 256], strides = [1, 1]} : vector<6x256xi1> to vector<1x256xi1>
    %c248_i32 = arith.constant 248 : i32
    %29 = tpu.dynamic_rotate %21 by %c248_i32 dim 1 : vector<4x256xf32>, i32 -> vector<4x256xf32>
    %cst_13 = arith.constant 0.000000e+00 : f32
    %30 = vector.shape_cast %28 : vector<1x256xi1> to vector<1x256xi1>
    %31 = vector.broadcast %30 : vector<1x256xi1> to vector<4x256xi1>
    %32 = vector.broadcast %cst_13 : f32 to vector<4x256xf32>
    %33 = arith.select %31, %29, %32 : vector<4x256xi1>, vector<4x256xf32>
    %34 = arith.maximumf %27, %33 : vector<4x256xf32>
    %35 = arith.maximumf %21, %34 : vector<4x256xf32>
    %36 = vector.extract_strided_slice %5 {offsets = [4, 0], sizes = [1, 256], strides = [1, 1]} : vector<6x256xi1> to vector<1x256xi1>
    %c64_i32 = arith.constant 64 : i32
    %37 = tpu.dynamic_rotate %35 by %c64_i32 dim 1 : vector<4x256xf32>, i32 -> vector<4x256xf32>
    %cst_14 = arith.constant 0.000000e+00 : f32
    %38 = vector.shape_cast %36 : vector<1x256xi1> to vector<1x256xi1>
    %39 = vector.broadcast %38 : vector<1x256xi1> to vector<4x256xi1>
    %40 = vector.broadcast %cst_14 : f32 to vector<4x256xf32>
    %41 = arith.select %39, %37, %40 : vector<4x256xi1>, vector<4x256xf32>
    %42 = vector.extract_strided_slice %5 {offsets = [5, 0], sizes = [1, 256], strides = [1, 1]} : vector<6x256xi1> to vector<1x256xi1>
    %c192_i32 = arith.constant 192 : i32
    %43 = tpu.dynamic_rotate %35 by %c192_i32 dim 1 : vector<4x256xf32>, i32 -> vector<4x256xf32>
    %cst_15 = arith.constant 0.000000e+00 : f32
    %44 = vector.shape_cast %42 : vector<1x256xi1> to vector<1x256xi1>
    %45 = vector.broadcast %44 : vector<1x256xi1> to vector<4x256xi1>
    %46 = vector.broadcast %cst_15 : f32 to vector<4x256xf32>
    %47 = arith.select %45, %43, %46 : vector<4x256xi1>, vector<4x256xf32>
    %48 = arith.maximumf %41, %47 : vector<4x256xf32>
    %49 = arith.maximumf %35, %48 : vector<4x256xf32>
    %cst_16 = arith.constant dense<0.000000e+00> : vector<8x256xf32>
    %50 = tpu.matmul %0, %49, %cst_16 {dimension_numbers = #tpu.dot_dimension_numbers<[1], [0], [0], [1], [0, 0, 1, 1], [], []>} : vector<8x4xf32>, vector<4x256xf32>, vector<8x256xf32> -> vector<8x256xf32>
    %51 = vector.broadcast %1 : vector<8x1xf32> to vector<8x256xf32>
    %52 = arith.addf %50, %51 : vector<8x256xf32>
    %cst_17 = arith.constant 0.000000e+00 : f32
    %53 = vector.broadcast %cst_17 : f32 to vector<8x256xf32>
    %54 = arith.maximumf %52, %53 : vector<8x256xf32>
    %cst_18 = arith.constant dense<0.000000e+00> : vector<8xf32>
    %55 = vector.multi_reduction <add>, %54, %cst_18 [1] : vector<8x256xf32> to vector<8xf32>
    %56 = vector.shape_cast %55 : vector<8xf32> to vector<8x1xf32>
    %cst_19 = arith.constant 3.906250e-03 : f32
    %57 = vector.broadcast %cst_19 : f32 to vector<8x1xf32>
    %58 = arith.mulf %56, %57 : vector<8x1xf32>
    %cst_20 = arith.constant dense<0.000000e+00> : vector<8x1xf32>
    %59 = tpu.matmul %2, %58, %cst_20 {dimension_numbers = #tpu.dot_dimension_numbers<[1], [0], [0], [1], [0, 0, 1, 1], [], []>} : vector<8x8xf32>, vector<8x1xf32>, vector<8x1xf32> -> vector<8x1xf32>
    %60 = arith.negf %59 : vector<8x1xf32>
    %61 = math.exp %60 : vector<8x1xf32>
    %cst_21 = arith.constant 1.000000e+00 : f32
    %62 = vector.broadcast %cst_21 : f32 to vector<8x1xf32>
    %63 = arith.addf %62, %61 : vector<8x1xf32>
    %64 = arith.divf %62, %63 : vector<8x1xf32>
    %65 = vector.broadcast %64 : vector<8x1xf32> to vector<8x256xf32>
    %66 = arith.mulf %54, %65 : vector<8x256xf32>
    %c0_22 = arith.constant 0 : index
    %c0_23 = arith.constant 0 : index
    %c0_24 = arith.constant 0 : index
    %67 = vector.load %arg6[%c0_22, %c0_23, %c0_24] : memref<1x8x256xf32, #tpu.memory_space<vmem>>, vector<1x8x256xf32>
    %68 = vector.shape_cast %67 : vector<1x8x256xf32> to vector<8x256xf32>
    %69 = vector.shape_cast %66 : vector<8x256xf32> to vector<1x8x256xf32>
    tpu.vector_store %arg6[%c0_22, %c0_23, %c0_24], %69 {strides = array<i32>} : memref<1x8x256xf32, #tpu.memory_space<vmem>>, vector<1x8x256xf32>,
    return
  }
  func.func @transform_0(%arg0: i32) -> (i32, i32) {
    %c0_i32 = arith.constant 0 : i32
    %c0_i32_0 = arith.constant 0 : i32
    %c0_i32_1 = arith.constant 0 : i32
    return %c0_i32, %c0_i32_0 : i32, i32
  }
  func.func @transform_1(%arg0: i32) -> (i32, i32, i32) {
    %c0_i32 = arith.constant 0 : i32
    %c0_i32_0 = arith.constant 0 : i32
    %c0_i32_1 = arith.constant 0 : i32
    return %arg0, %c0_i32, %c0_i32_0 : i32, i32, i32
  }
  func.func @transform_2(%arg0: i32) -> (i32, i32) {
    %c0_i32 = arith.constant 0 : i32
    %c0_i32_0 = arith.constant 0 : i32
    %c0_i32_1 = arith.constant 0 : i32
    return %c0_i32, %c0_i32_0 : i32, i32
  }
  func.func @transform_3(%arg0: i32) -> (i32, i32) {
    %c0_i32 = arith.constant 0 : i32
    %c0_i32_0 = arith.constant 0 : i32
    %c0_i32_1 = arith.constant 0 : i32
    return %c0_i32, %c0_i32_0 : i32, i32
  }
  func.func @transform_4(%arg0: i32) -> (i32, i32) {
    %c0_i32 = arith.constant 0 : i32
    %c0_i32_0 = arith.constant 0 : i32
    %c0_i32_1 = arith.constant 0 : i32
    return %c0_i32, %c0_i32_0 : i32, i32
  }
  func.func @transform_5(%arg0: i32) -> (i32, i32, i32) {
    %c0_i32 = arith.constant 0 : i32
    %c0_i32_0 = arith.constant 0 : i32
    %c0_i32_1 = arith.constant 0 : i32
    return %arg0, %c0_i32, %c0_i32_0 : i32, i32, i32
  }
}

</mosaic_0001>

<llo_original>
// kernel: tpu_custom_call.1
$region0: #{tpu_custom_call.1}
  #allocation0 [shape = 'u32[]', space=smem, size = 0x4, offset = 0x4, fixed_abs, tag = 'smem constant byte address 0x4 - core index']
  #allocation1 [shape = 'u32[144,128]{1,0:T(1,128)}', space=vmem, size = 0x12000, scoped, tag = 'internal scratch']
  %s0 = inlined_call_operand.vmem [shape: f32[6,256], index: 0, kind: input, shape index: {}]
  %s1 = inlined_call_operand.hbm [shape: f32[2,4,256], index: 1, kind: input, shape index: {}]
  %s2 = inlined_call_operand.vmem [shape: f32[8,4], index: 2, kind: input, shape index: {}]
  %s3 = inlined_call_operand.vmem [shape: f32[8,1], index: 3, kind: input, shape index: {}]
  %s4 = inlined_call_operand.vmem [shape: f32[8,8], index: 4, kind: input, shape index: {}]
  %s5 = inlined_call_operand.hbm [shape: f32[2,8,256], index: 5, kind: output, shape index: {}]
  %s6 = sld [smem:[#allocation0]]
  $region57: #{tpu_custom_call.1} parent=0
    _
  %s8 = ssub.s32 1, %s6
  %s9 = scalar_select 0, %s8, %s6
  $region1: #{tpu_custom_call.1} parent=0
    #allocation2 [shape = 'u8[8192]{0}', space=vmem, size = 0x2000, scoped, tag = 'input window, operand 1']
    #allocation3 [shape = 's32[2]{0}', space=sflag, size = 0x8, scoped, tag = 'scoped memory for tpu_custom_call.1']
    #allocation4 [shape = 's32[2]{0}', space=sflag, size = 0x8, scoped, tag = 'scoped memory for tpu_custom_call.1']
    #allocation5 [shape = 'u8[16384]{0}', space=vmem, size = 0x4000, scoped, tag = 'output window, operand 0']
    %10 = vsyncpa [#allocation3], 0
    %s11 = scalar_lea.sflag [#allocation3], 1
    %12 = vsyncpa %s11, 0
    %13 = vsyncpa [#allocation4], 0
    %s14 = scalar_lea.sflag [#allocation4], 1
    %15 = vsyncpa %s14, 0
    loop: start=0, step=1, limit=4
    $region2: #{tpu_custom_call.1} parent=1 // loop_pre_header
      _
    $region3: #{tpu_custom_call.1} parent=1 // loop_header
      %s17 = sphi 0, %s21
      %p18 = scmp.ge.s32.totalorder %s17, 4
      %s25 = sphi 0, %s25
      %s27 = sphi 0, %s25
      %s28 = sphi 0, %s27
      %s42 = sphi 0, %s28
      %s48 = sphi 0, %s50
      %s51 = sphi 0, %s48
      %s52 = sphi 0, %s51
      %s68 = sphi 0, %s52
      %s72 = sphi 0, %s72
      %s74 = sphi 0, %s72
      %s75 = sphi 0, %s74
      %s89 = sphi 0, %s75
      %s93 = sphi 0, %s93
      %s95 = sphi 0, %s93
      %s96 = sphi 0, %s95
      %s110 = sphi 0, %s96
      %s114 = sphi 0, %s114
      %s116 = sphi 0, %s114
      %s117 = sphi 0, %s116
      %s131 = sphi 0, %s117
      %s137 = sphi 0, %s139
      %s140 = sphi 0, %s137
      %s141 = sphi 0, %s140
      %s157 = sphi 0, %s141
    $region4: #{tpu_custom_call.1} parent=1 // loop_header_branch
      %20 = sbr.rel (%p18) target = $region8
    $region5: #{tpu_custom_call.1} parent=1 // loop_body
      %s22 = ssub.s32 %s17, 1
      %s23 = ssub.s32 %s17, 2
      %s24 = sadd.s32 %s17, 1
      %s26 = sadd.s32 %s25, 1
      %p29 = scmp.eq.s32.totalorder %s17, 1
      %p30 = scmp.ne.s32.totalorder %s25, %s27
      %p31 = scmp.eq.s32.totalorder %s17, 0
      %p32 = por %p30, %p31
      %p33 = scmp.ne.s32.totalorder %s25, %s27
      %p34 = scmp.eq.s32.totalorder %s22, 1
      %p35 = por %p33, %p34
      %p36 = scmp.ne.s32.totalorder %s27, %s28
      %p37 = scmp.eq.s32.totalorder %s22, 0
      %p38 = por %p36, %p37
      %p39 = scmp.ne.s32.totalorder %s27, %s28
      %p40 = scmp.eq.s32.totalorder %s23, 1
      %p41 = por %p39, %p40
      %p43 = scmp.ne.s32.totalorder %s28, %s42
      %p44 = scmp.eq.s32.totalorder %s23, 0
      %p45 = por %p43, %p44
      %s46 = ssub.s32 %s17, %s24
      %p47 = scmp.eq.s32.totalorder %s46, 0
      %s49 = sadd.s32 %s48, 1
      %s50 = scalar_select %p47, %s48, %s49
      %p53 = pneg %p47
      %p54 = scmp.eq.s32.totalorder %s17, 1
      %p55 = por %p53, %p54
      %p56 = scmp.ne.s32.totalorder %s48, %s51
      %p57 = scmp.eq.s32.totalorder %s17, 0
      %p58 = por %p56, %p57
      %p59 = scmp.ne.s32.totalorder %s48, %s51
      %p60 = scmp.eq.s32.totalorder %s22, 1
      %p61 = por %p59, %p60
      %p62 = scmp.ne.s32.totalorder %s51, %s52
      %p63 = scmp.eq.s32.totalorder %s22, 0
      %p64 = por %p62, %p63
      %p65 = scmp.ne.s32.totalorder %s51, %s52
      %p66 = scmp.eq.s32.totalorder %s23, 1
      %p67 = por %p65, %p66
      %p69 = scmp.ne.s32.totalorder %s52, %s68
      %p70 = scmp.eq.s32.totalorder %s23, 0
      %p71 = por %p69, %p70
      %s73 = sadd.s32 %s72, 1
      %p76 = scmp.eq.s32.totalorder %s17, 1
      %p77 = scmp.ne.s32.totalorder %s72, %s74
      %p78 = scmp.eq.s32.totalorder %s17, 0
      %p79 = por %p77, %p78
      %p80 = scmp.ne.s32.totalorder %s72, %s74
      %p81 = scmp.eq.s32.totalorder %s22, 1
      %p82 = por %p80, %p81
      %p83 = scmp.ne.s32.totalorder %s74, %s75
      %p84 = scmp.eq.s32.totalorder %s22, 0
      %p85 = por %p83, %p84
      %p86 = scmp.ne.s32.totalorder %s74, %s75
      %p87 = scmp.eq.s32.totalorder %s23, 1
      %p88 = por %p86, %p87
      %p90 = scmp.ne.s32.totalorder %s75, %s89
      %p91 = scmp.eq.s32.totalorder %s23, 0
      %p92 = por %p90, %p91
      %s94 = sadd.s32 %s93, 1
      %p97 = scmp.eq.s32.totalorder %s17, 1
      %p98 = scmp.ne.s32.totalorder %s93, %s95
      %p99 = scmp.eq.s32.totalorder %s17, 0
      %p100 = por %p98, %p99
      %p101 = scmp.ne.s32.totalorder %s93, %s95
      %p102 = scmp.eq.s32.totalorder %s22, 1
      %p103 = por %p101, %p102
      %p104 = scmp.ne.s32.totalorder %s95, %s96
      %p105 = scmp.eq.s32.totalorder %s22, 0
      %p106 = por %p104, %p105
      %p107 = scmp.ne.s32.totalorder %s95, %s96
      %p108 = scmp.eq.s32.totalorder %s23, 1
      %p109 = por %p107, %p108
      %p111 = scmp.ne.s32.totalorder %s96, %s110
      %p112 = scmp.eq.s32.totalorder %s23, 0
      %p113 = por %p111, %p112
      %s115 = sadd.s32 %s114, 1
      %p118 = scmp.eq.s32.totalorder %s17, 1
      %p119 = scmp.ne.s32.totalorder %s114, %s116
      %p120 = scmp.eq.s32.totalorder %s17, 0
      %p121 = por %p119, %p120
      %p122 = scmp.ne.s32.totalorder %s114, %s116
      %p123 = scmp.eq.s32.totalorder %s22, 1
      %p124 = por %p122, %p123
      %p125 = scmp.ne.s32.totalorder %s116, %s117
      %p126 = scmp.eq.s32.totalorder %s22, 0
      %p127 = por %p125, %p126
      %p128 = scmp.ne.s32.totalorder %s116, %s117
      %p129 = scmp.eq.s32.totalorder %s23, 1
      %p130 = por %p128, %p129
      %p132 = scmp.ne.s32.totalorder %s117, %s131
      %p133 = scmp.eq.s32.totalorder %s23, 0
      %p134 = por %p132, %p133
      %s135 = ssub.s32 %s17, %s24
      %p136 = scmp.eq.s32.totalorder %s135, 0
      %s138 = sadd.s32 %s137, 1
      %s139 = scalar_select %p136, %s137, %s138
      %p142 = pneg %p136
      %p143 = scmp.eq.s32.totalorder %s17, 1
      %p144 = por %p142, %p143
      %p145 = scmp.ne.s32.totalorder %s137, %s140
      %p146 = scmp.eq.s32.totalorder %s17, 0
      %p147 = por %p145, %p146
      %p148 = scmp.ne.s32.totalorder %s137, %s140
      %p149 = scmp.eq.s32.totalorder %s22, 1
      %p150 = por %p148, %p149
      %p151 = scmp.ne.s32.totalorder %s140, %s141
      %p152 = scmp.eq.s32.totalorder %s22, 0
      %p153 = por %p151, %p152
      %p154 = scmp.ne.s32.totalorder %s140, %s141
      %p155 = scmp.eq.s32.totalorder %s23, 1
      %p156 = por %p154, %p155
      %p158 = scmp.ne.s32.totalorder %s141, %s157
      %p159 = scmp.eq.s32.totalorder %s23, 0
      %p160 = por %p158, %p159
      %p161 = scmp.le.s32.totalorder 1, %s17
      %p162 = scmp.lt.s32.totalorder %s17, 3
      %p163 = pnand %p161, %p162
      %p164 = pneg %p163
      // Predicated region
      $region9: #{tpu_custom_call.1} parent=5 // pred_check
        _
      $region10: #{tpu_custom_call.1} parent=5 // pred_check_branch
        %166 = sbr.rel (%p163) target = $region12
      $region11: #{tpu_custom_call.1} parent=5 // pred_region
        %s167 = ssub.s32 %s17, 1
        // Predicated region
        $region13: #{tpu_custom_call.1} parent=11 // pred_check
          %p168 = pneg %p38
        $region14: #{tpu_custom_call.1} parent=11 // pred_check_branch
          %170 = sbr.rel (%p168) target = $region16
        $region15: #{tpu_custom_call.1} parent=11 // pred_region
          _
        $region16: #{tpu_custom_call.1} parent=11 // pred_fallthru
          _
        // Predicated region
        $region17: #{tpu_custom_call.1} parent=11 // pred_check
          %p171 = pneg %p85
        $region18: #{tpu_custom_call.1} parent=11 // pred_check_branch
          %173 = sbr.rel (%p171) target = $region20
        $region19: #{tpu_custom_call.1} parent=11 // pred_region
          _
        $region20: #{tpu_custom_call.1} parent=11 // pred_fallthru
          _
        // Predicated region
        $region21: #{tpu_custom_call.1} parent=11 // pred_check
          %p174 = pneg %p106
        $region22: #{tpu_custom_call.1} parent=11 // pred_check_branch
          %176 = sbr.rel (%p174) target = $region24
        $region23: #{tpu_custom_call.1} parent=11 // pred_region
          _
        $region24: #{tpu_custom_call.1} parent=11 // pred_fallthru
          _
        // Predicated region
        $region25: #{tpu_custom_call.1} parent=11 // pred_check
          %p177 = pneg %p127
        $region26: #{tpu_custom_call.1} parent=11 // pred_check_branch
          %179 = sbr.rel (%p177) target = $region28
        $region27: #{tpu_custom_call.1} parent=11 // pred_region
          _
        $region28: #{tpu_custom_call.1} parent=11 // pred_fallthru
          _
      $region12: #{tpu_custom_call.1} parent=5 // pred_fallthru
        _
      %p180 = scmp.lt.s32.totalorder %s17, 2
      // Predicated region
      $region29: #{tpu_custom_call.1} parent=5 // pred_check
        %p181 = pneg %p180
      $region30: #{tpu_custom_call.1} parent=5 // pred_check_branch
        %183 = sbr.rel (%p181) target = $region32
      $region31: #{tpu_custom_call.1} parent=5 // pred_region
        // Predicated region
        $region33: #{tpu_custom_call.1} parent=31 // pred_check
          %p184 = pneg %p58
        $region34: #{tpu_custom_call.1} parent=31 // pred_check_branch
          %186 = sbr.rel (%p184) target = $region36
        $region35: #{tpu_custom_call.1} parent=31 // pred_region
          %s187 = sand.u32 %s48, 1
          %s188 = scalar_lea.sflag [#allocation3], %s187
          %s189 = sand.u32 %s48, 1
          %s190 = smul.addr %s189, 8
          %s191 = scalar_lea.vmem [#allocation2], %s190
          %s193 = ssub.s32 128, 128
          %194 = vsyncadd %s188, %s193
          %s195 = smul.addr %s17, 2
          %s196 = smul.addr %s195, 64
          %s197 = scalar_lea.hbm %s1, %s196
          %s199 = sshll.u32 %s191, 4
          %s200 = int_to_ptr.vmem [resolvable:$true] %s199
          %202 = dma.hbm_to_vmem [thread:$0]  %s197, 128, %s200, %s188
        $region36: #{tpu_custom_call.1} parent=31 // pred_fallthru
          _
      $region32: #{tpu_custom_call.1} parent=5 // pred_fallthru
        _
      %p203 = scmp.le.s32.totalorder 1, %s17
      %p204 = scmp.lt.s32.totalorder %s17, 3
      %p205 = pnand %p203, %p204
      %p206 = pneg %p205
      // Predicated region
      $region37: #{tpu_custom_call.1} parent=5 // pred_check
        _
      $region38: #{tpu_custom_call.1} parent=5 // pred_check_branch
        %208 = sbr.rel (%p205) target = $region40
      $region39: #{tpu_custom_call.1} parent=5 // pred_region
        %s209 = ssub.s32 %s17, 1
        %s210 = sand.u32 %s51, 1
        %s211 = scalar_lea.sflag [#allocation3], %s210
        %s212 = sand.u32 %s51, 1
        %s213 = smul.addr %s212, 8
        %s214 = scalar_lea.vmem [#allocation2], %s213
        // Predicated region
        $region41: #{tpu_custom_call.1} parent=39 // pred_check
          %p215 = pneg %p64
        $region42: #{tpu_custom_call.1} parent=39 // pred_check_branch
          %217 = sbr.rel (%p215) target = $region44
        $region43: #{tpu_custom_call.1} parent=39 // pred_region
          %218 = dma.done %s211, 128
        $region44: #{tpu_custom_call.1} parent=39 // pred_fallthru
          _
        %p219 = pneg %p38
        %p220 = pneg %p35
        %s221 = sand.u32 %s51, 1
        %s222 = scalar_lea.sflag [#allocation3], %s221
        %s223 = sand.u32 %s51, 1
        %s224 = smul.addr %s223, 8
        %s225 = scalar_lea.vmem [#allocation2], %s224
        %p226 = pneg %p64
        %p227 = pneg %p61
        %p228 = pneg %p85
        %p229 = pneg %p82
        %p230 = pneg %p106
        %p231 = pneg %p103
        %p232 = pneg %p127
        %p233 = pneg %p124
        %p234 = pneg %p153
        %p235 = pneg %p150
        %s236 = sand.u32 %s140, 1
        %s237 = scalar_lea.sflag [#allocation4], %s236
        %s238 = sand.u32 %s140, 1
        %s239 = smul.addr %s238, 16
        %s240 = scalar_lea.vmem [#allocation5], %s239
        %v241 = vld [vmem:[%s2] sm:$0xff]
        %v242 = vld [vmem:[%s3] sm:$0xff]
        %v243 = vld [vmem:[%s4] sm:$0xff]
        %v244 = vld [vmem:[%s0] sm:$0x3f]
        %v245 = vld [vmem:[%s0 + $0x8] sm:$0x3f]
        %vm246 = vcmp.gt.f32.partialorder %v244, 0.5
        %vm247 = vcmp.gt.f32.partialorder %v245, 0.5
        %v248 = vld [vmem:[%s214] sm:$0xff]
        %v250 = vcombine.high %v248, %v248
        %252 = vrot.lane.b32.xlu0 %v248, 1
        %v253 = vpop.permute.xlu0 %252
        %254 = vrot.lane.b32.xlu0 %v250, 1
        %v255 = vpop.permute.xlu0 %254
        %v256 = vlaneseq
        %v257 = vand.u32 %v256, 127
        %vm258 = vcmp.lt.s32.totalorder %v257, 1
        %v259 = vsel %vm258, %v253, %v255
        %v260 = vsel %vm258, %v255, %v253
        %v261 = vsel %vm246, 1, 0
        %v262 = vsel %vm247, 1, 0
        %vm263 = vcmp.eq.s32.totalorder %v261, 1
        %vm264 = vcmp.eq.s32.totalorder %v262, 1
        %v267 = vrot.slane %v260, 1
        %v268 = vrot.slane %v259, 1
        %v269 = vrot.slane %v260, 2
        %v270 = vrot.slane %v259, 2
        %v271 = vrot.slane %v260, 3
        %v272 = vrot.slane %v259, 3
        %v281 = vsel %vm263, %v260, 0.0
        %v282 = vsel %vm264, %v259, 0.0
        %v283 = vsel %vm263, %v267, 0.0
        %v284 = vsel %vm264, %v268, 0.0
        %v285 = vsel %vm263, %v269, 0.0
        %v286 = vsel %vm264, %v270, 0.0
        %v287 = vsel %vm263, %v271, 0.0
        %v288 = vsel %vm264, %v272, 0.0
        %289 = vrot.lane.b32.xlu0 %v248, 127
        %v290 = vpop.permute.xlu0 %289
        %291 = vrot.lane.b32.xlu0 %v250, 127
        %v292 = vpop.permute.xlu0 %291
        %vm293 = vcmp.lt.s32.totalorder %v257, 127
        %v294 = vsel %vm293, %v290, %v292
        %v295 = vsel %vm293, %v292, %v290
        %v298 = vrot.slane %v294, 7
        %v299 = vrot.slane %v295, 7
        %v300 = vrot.slane %v294, 1
        %v301 = vrot.slane %v295, 1
        %v302 = vrot.slane %v294, 2
        %v303 = vrot.slane %v295, 2
        %v312 = vsel %vm263, %v298, 0.0
        %v313 = vsel %vm264, %v299, 0.0
        %v314 = vsel %vm263, %v294, 0.0
        %v315 = vsel %vm264, %v295, 0.0
        %v316 = vsel %vm263, %v300, 0.0
        %v317 = vsel %vm264, %v301, 0.0
        %v318 = vsel %vm263, %v302, 0.0
        %v319 = vsel %vm264, %v303, 0.0
        %v328 = vrot.slane %v312, 1
        %v329 = vrot.slane %v313, 1
        %v330 = vrot.slane %v314, 1
        %v331 = vrot.slane %v315, 1
        %v332 = vrot.slane %v316, 1
        %v333 = vrot.slane %v317, 1
        %v334 = vrot.slane %v318, 1
        %v335 = vrot.slane %v319, 1
        %v344 = vmax.f32 %v281, %v328
        %v345 = vmax.f32 %v282, %v329
        %v346 = vmax.f32 %v283, %v330
        %v347 = vmax.f32 %v284, %v331
        %v348 = vmax.f32 %v285, %v332
        %v349 = vmax.f32 %v286, %v333
        %v350 = vmax.f32 %v287, %v334
        %v351 = vmax.f32 %v288, %v335
        %v360 = vcombine.low %v344, %v345
        %v361 = vcombine.low %v346, %v347
        %v362 = vcombine.low %v348, %v349
        %v363 = vcombine.low %v350, %v351
        %v364 = vrot.slane %v361, 7
        %vm365 = vcmask 1041409
        %v366 = vsel %vm365, %v364, %v360
        %vm367 = vcmask 1045509
        %v368 = vsel %vm367, %v364, %v366
        %v369 = vrot.slane %v362, 6
        %vm370 = vcmask 1042434
        %v371 = vsel %vm370, %v369, %v368
        %vm372 = vcmask 1046534
        %v373 = vsel %vm372, %v369, %v371
        %v374 = vrot.slane %v363, 5
        %vm375 = vcmask 1043459
        %v376 = vsel %vm375, %v374, %v373
        %vm377 = vcmask 1047559
        %v378 = vsel %vm377, %v374, %v376
        %v380 = vmax.f32 %v248, %v378
        %v382 = vcombine.high %v380, %v380
        %384 = vrot.lane.b32.xlu0 %v380, 8
        %v385 = vpop.permute.xlu0 %384
        %386 = vrot.lane.b32.xlu0 %v382, 8
        %v387 = vpop.permute.xlu0 %386
        %vm388 = vcmp.lt.s32.totalorder %v257, 8
        %v389 = vsel %vm388, %v385, %v387
        %v390 = vsel %vm388, %v387, %v385
        %v393 = vrot.slane %v390, 6
        %v394 = vrot.slane %v389, 6
        %v395 = vrot.slane %v390, 7
        %v396 = vrot.slane %v389, 7
        %v397 = vrot.slane %v390, 1
        %v398 = vrot.slane %v389, 1
        %v407 = vsel %vm263, %v393, 0.0
        %v408 = vsel %vm264, %v394, 0.0
        %v409 = vsel %vm263, %v395, 0.0
        %v410 = vsel %vm264, %v396, 0.0
        %v411 = vsel %vm263, %v390, 0.0
        %v412 = vsel %vm264, %v389, 0.0
        %v413 = vsel %vm263, %v397, 0.0
        %v414 = vsel %vm264, %v398, 0.0
        %415 = vrot.lane.b32.xlu0 %v380, 120
        %v416 = vpop.permute.xlu0 %415
        %417 = vrot.lane.b32.xlu0 %v382, 120
        %v418 = vpop.permute.xlu0 %417
        %vm419 = vcmp.lt.s32.totalorder %v257, 120
        %v420 = vsel %vm419, %v416, %v418
        %v421 = vsel %vm419, %v418, %v416
        %v424 = vrot.slane %v420, 5
        %v425 = vrot.slane %v421, 5
        %v426 = vrot.slane %v420, 6
        %v427 = vrot.slane %v421, 6
        %v428 = vrot.slane %v420, 7
        %v429 = vrot.slane %v421, 7
        %v438 = vsel %vm263, %v424, 0.0
        %v439 = vsel %vm264, %v425, 0.0
        %v440 = vsel %vm263, %v426, 0.0
        %v441 = vsel %vm264, %v427, 0.0
        %v442 = vsel %vm263, %v428, 0.0
        %v443 = vsel %vm264, %v429, 0.0
        %v444 = vsel %vm263, %v420, 0.0
        %v445 = vsel %vm264, %v421, 0.0
        %v454 = vrot.slane %v438, 1
        %v455 = vrot.slane %v439, 1
        %v456 = vrot.slane %v440, 1
        %v457 = vrot.slane %v441, 1
        %v458 = vrot.slane %v442, 1
        %v459 = vrot.slane %v443, 1
        %v460 = vrot.slane %v444, 1
        %v461 = vrot.slane %v445, 1
        %v470 = vmax.f32 %v407, %v454
        %v471 = vmax.f32 %v408, %v455
        %v472 = vmax.f32 %v409, %v456
        %v473 = vmax.f32 %v410, %v457
        %v474 = vmax.f32 %v411, %v458
        %v475 = vmax.f32 %v412, %v459
        %v476 = vmax.f32 %v413, %v460
        %v477 = vmax.f32 %v414, %v461
        %v486 = vcombine.low %v470, %v471
        %v487 = vcombine.low %v472, %v473
        %v488 = vcombine.low %v474, %v475
        %v489 = vcombine.low %v476, %v477
        %v490 = vrot.slane %v486, 2
        %v491 = vrot.slane %v487, 1
        %v492 = vsel %vm365, %v491, %v490
        %v493 = vsel %vm367, %v491, %v492
        %v494 = vsel %vm370, %v488, %v493
        %v495 = vsel %vm372, %v488, %v494
        %v496 = vrot.slane %v489, 7
        %v497 = vsel %vm375, %v496, %v495
        %v498 = vsel %vm377, %v496, %v497
        %v500 = vmax.f32 %v380, %v498
        %v502 = vcombine.high %v500, %v500
        %504 = vrot.lane.b32.xlu0 %v500, 64
        %v505 = vpop.permute.xlu0 %504
        %506 = vrot.lane.b32.xlu0 %v502, 64
        %v507 = vpop.permute.xlu0 %506
        %vm508 = vcmp.lt.s32.totalorder %v257, 64
        %v509 = vsel %vm508, %v505, %v507
        %v510 = vsel %vm508, %v507, %v505
        %v513 = vrot.slane %v510, 4
        %v514 = vrot.slane %v509, 4
        %v515 = vrot.slane %v510, 5
        %v516 = vrot.slane %v509, 5
        %v517 = vrot.slane %v510, 6
        %v518 = vrot.slane %v509, 6
        %v519 = vrot.slane %v510, 7
        %v520 = vrot.slane %v509, 7
        %v529 = vsel %vm263, %v513, 0.0
        %v530 = vsel %vm264, %v514, 0.0
        %v531 = vsel %vm263, %v515, 0.0
        %v532 = vsel %vm264, %v516, 0.0
        %v533 = vsel %vm263, %v517, 0.0
        %v534 = vsel %vm264, %v518, 0.0
        %v535 = vsel %vm263, %v519, 0.0
        %v536 = vsel %vm264, %v520, 0.0
        %v537 = vrot.slane %v509, 3
        %v538 = vrot.slane %v510, 3
        %v541 = vsel %vm263, %v537, 0.0
        %v542 = vsel %vm264, %v538, 0.0
        %v543 = vsel %vm263, %v514, 0.0
        %v544 = vsel %vm264, %v513, 0.0
        %v545 = vsel %vm263, %v516, 0.0
        %v546 = vsel %vm264, %v515, 0.0
        %v547 = vsel %vm263, %v518, 0.0
        %v548 = vsel %vm264, %v517, 0.0
        %v557 = vrot.slane %v541, 1
        %v558 = vrot.slane %v542, 1
        %v559 = vrot.slane %v543, 1
        %v560 = vrot.slane %v544, 1
        %v561 = vrot.slane %v545, 1
        %v562 = vrot.slane %v546, 1
        %v563 = vrot.slane %v547, 1
        %v564 = vrot.slane %v548, 1
        %v573 = vmax.f32 %v529, %v557
        %v574 = vmax.f32 %v530, %v558
        %v575 = vmax.f32 %v531, %v559
        %v576 = vmax.f32 %v532, %v560
        %v577 = vmax.f32 %v533, %v561
        %v578 = vmax.f32 %v534, %v562
        %v579 = vmax.f32 %v535, %v563
        %v580 = vmax.f32 %v536, %v564
        %v589 = vcombine.high %v573, %v574
        %v590 = vcombine.high %v575, %v576
        %v591 = vcombine.high %v577, %v578
        %v592 = vcombine.high %v579, %v580
        %v593 = vrot.slane %v590, 7
        %v594 = vsel %vm365, %v593, %v589
        %v595 = vsel %vm367, %v593, %v594
        %v596 = vrot.slane %v591, 6
        %v597 = vsel %vm370, %v596, %v595
        %v598 = vsel %vm372, %v596, %v597
        %v599 = vrot.slane %v592, 5
        %v600 = vsel %vm375, %v599, %v598
        %v601 = vsel %vm377, %v599, %v600
        %v603 = vmax.f32 %v500, %v601
        %605 = vset.pattern.permute.xlu0 0
        %606 = vperm.xlu0 %605, %v242
        %v607 = vpop.permute.xlu0 %606
        %v610 = vcombine.high %v603, %v603
        %vm611 = vcmask 31744
        %v613 = vsel %vm611, %v241, 0
        %vm615 = vcmask 1043456
        %v616 = vsel %vm615, %v603, 0
        %v618 = vsel %vm615, %v610, 0
        %620 = vmatprep.subr.mxu0 %v618
        %621 = vmatpush1.msra.mxu0 %v616
        %622 = vmatprep.subr.mxu0 0.0
        %623 = vmatpush1.msra.mxu0 0.0
        %624 = vmatprep.subr.mxu0 0.0
        %625 = vmatpush1.msra.mxu0 0.0
        %626 = vmatprep.subr.mxu0 0.0
        %627 = vmatpush1.msra.mxu0 0.0
        %628 = vmatprep.subr.mxu0 0.0
        %629 = vmatpush1.msra.mxu0 0.0
        %630 = vmatprep.subr.mxu0 0.0
        %631 = vmatpush1.msra.mxu0 0.0
        %632 = vmatprep.subr.mxu0 0.0
        %633 = vmatpush1.msra.mxu0 0.0
        %634 = vmatprep.subr.mxu0 0.0
        %635 = vmatpush1.msra.mxu0 0.0
        %636 = vmatprep.subr.mxu0 0.0
        %637 = vmatpush1.msra.mxu0 0.0
        %638 = vmatprep.subr.mxu0 0.0
        %639 = vmatpush1.msra.mxu0 0.0
        %640 = vmatprep.subr.mxu0 0.0
        %641 = vmatpush1.msra.mxu0 0.0
        %642 = vmatprep.subr.mxu0 0.0
        %643 = vmatpush1.msra.mxu0 0.0
        %644 = vmatprep.subr.mxu0 0.0
        %645 = vmatpush1.msra.mxu0 0.0
        %646 = vmatprep.subr.mxu0 0.0
        %647 = vmatpush1.msra.mxu0 0.0
        %648 = vmatprep.subr.mxu0 0.0
        %649 = vmatpush1.msra.mxu0 0.0
        %650 = vmatprep.subr.mxu0 0.0
        %651 = vmatpush1.msra.mxu0 0.0
        %652 = vmatprep.subr.mxu0 0.0
        %653 = vmatpush1.msra.mxu0 0.0
        %654 = vmatprep.subr.mxu0 0.0
        %655 = vmatpush1.msra.mxu0 0.0
        %656 = vmatprep.subr.mxu0 0.0
        %657 = vmatpush1.msra.mxu0 0.0
        %658 = vmatprep.subr.mxu0 0.0
        %659 = vmatpush1.msra.mxu0 0.0
        %660 = vmatprep.subr.mxu0 0.0
        %661 = vmatpush1.msra.mxu0 0.0
        %662 = vmatprep.subr.mxu0 0.0
        %663 = vmatpush1.msra.mxu0 0.0
        %664 = vmatprep.subr.mxu0 0.0
        %665 = vmatpush1.msra.mxu0 0.0
        %666 = vmatprep.subr.mxu0 0.0
        %667 = vmatpush1.msra.mxu0 0.0
        %668 = vmatprep.subr.mxu0 0.0
        %669 = vmatpush1.msra.mxu0 0.0
        %670 = vmatprep.subr.mxu0 0.0
        %671 = vmatpush1.msra.mxu0 0.0
        %672 = vmatprep.subr.mxu0 0.0
        %673 = vmatpush1.msra.mxu0 0.0
        %674 = vmatprep.subr.mxu0 0.0
        %675 = vmatpush1.msra.mxu0 0.0
        %676 = vmatprep.subr.mxu0 0.0
        %677 = vmatpush1.msra.mxu0 0.0
        %678 = vmatprep.subr.mxu0 0.0
        %679 = vmatpush1.msra.mxu0 0.0
        %680 = vmatprep.subr.mxu0 0.0
        %681 = vmatpush1.msra.mxu0 0.0
        %682 = vmatprep.subr.mxu0 0.0
        %683 = vmatpush1.msra.mxu0 0.0
        %684 = vmatprep.mubr.f32.mxu0 0.0
        %685 = vmatmul.mubr.f32.gmra.mrb[0].mxu0 %v613
        %v686 = vpop.f32.mrb[0].mxu0
        %v687 = vadd.f32 %v607, %v686
        %v688 = vpop.f32.mrb[0].mxu0
        %v689 = vadd.f32 %v607, %v688
        %690 = vdwg.mxu0
        %v691 = vmax.f32 %v687, 0.0
        %v692 = vmax.f32 %v689, 0.0
        %v693 = vadd.f32 %v691, %v692
        %694 = vadd.xlane.f32.xlu0 %v693
        %v695 = vpop.xlane.xlu0 %694
        %v696 = vmul.f32 %v695, 0.00390625
        %vm697 = vcmask 64512
        %v699 = vsel %vm697, %v243, 0
        %701 = vmatprep.subr.mxu0 0.0
        %702 = vmatpush1.msra.mxu0 %v696
        %703 = vmatprep.subr.mxu0 0.0
        %704 = vmatpush1.msra.mxu0 0.0
        %705 = vmatprep.subr.mxu0 0.0
        %706 = vmatpush1.msra.mxu0 0.0
        %707 = vmatprep.subr.mxu0 0.0
        %708 = vmatpush1.msra.mxu0 0.0
        %709 = vmatprep.subr.mxu0 0.0
        %710 = vmatpush1.msra.mxu0 0.0
        %711 = vmatprep.subr.mxu0 0.0
        %712 = vmatpush1.msra.mxu0 0.0
        %713 = vmatprep.subr.mxu0 0.0
        %714 = vmatpush1.msra.mxu0 0.0
        %715 = vmatprep.subr.mxu0 0.0
        %716 = vmatpush1.msra.mxu0 0.0
        %717 = vmatprep.subr.mxu0 0.0
        %718 = vmatpush1.msra.mxu0 0.0
        %719 = vmatprep.subr.mxu0 0.0
        %720 = vmatpush1.msra.mxu0 0.0
        %721 = vmatprep.subr.mxu0 0.0
        %722 = vmatpush1.msra.mxu0 0.0
        %723 = vmatprep.subr.mxu0 0.0
        %724 = vmatpush1.msra.mxu0 0.0
        %725 = vmatprep.subr.mxu0 0.0
        %726 = vmatpush1.msra.mxu0 0.0
        %727 = vmatprep.subr.mxu0 0.0
        %728 = vmatpush1.msra.mxu0 0.0
        %729 = vmatprep.subr.mxu0 0.0
        %730 = vmatpush1.msra.mxu0 0.0
        %731 = vmatprep.subr.mxu0 0.0
        %732 = vmatpush1.msra.mxu0 0.0
        %733 = vmatprep.subr.mxu0 0.0
        %734 = vmatpush1.msra.mxu0 0.0
        %735 = vmatprep.subr.mxu0 0.0
        %736 = vmatpush1.msra.mxu0 0.0
        %737 = vmatprep.subr.mxu0 0.0
        %738 = vmatpush1.msra.mxu0 0.0
        %739 = vmatprep.subr.mxu0 0.0
        %740 = vmatpush1.msra.mxu0 0.0
        %741 = vmatprep.subr.mxu0 0.0
        %742 = vmatpush1.msra.mxu0 0.0
        %743 = vmatprep.subr.mxu0 0.0
        %744 = vmatpush1.msra.mxu0 0.0
        %745 = vmatprep.subr.mxu0 0.0
        %746 = vmatpush1.msra.mxu0 0.0
        %747 = vmatprep.subr.mxu0 0.0
        %748 = vmatpush1.msra.mxu0 0.0
        %749 = vmatprep.subr.mxu0 0.0
        %750 = vmatpush1.msra.mxu0 0.0
        %751 = vmatprep.subr.mxu0 0.0
        %752 = vmatpush1.msra.mxu0 0.0
        %753 = vmatprep.subr.mxu0 0.0
        %754 = vmatpush1.msra.mxu0 0.0
        %755 = vmatprep.subr.mxu0 0.0
        %756 = vmatpush1.msra.mxu0 0.0
        %757 = vmatprep.subr.mxu0 0.0
        %758 = vmatpush1.msra.mxu0 0.0
        %759 = vmatprep.subr.mxu0 0.0
        %760 = vmatpush1.msra.mxu0 0.0
        %761 = vmatprep.subr.mxu0 0.0
        %762 = vmatpush1.msra.mxu0 0.0
        %763 = vmatprep.subr.mxu0 0.0
        %764 = vmatpush1.msra.mxu0 0.0
        %765 = vmatprep.mubr.f32.mxu0 0.0
        %766 = vmatmul.mubr.f32.gmra.mrb[0].mxu0 %v699
        %v767 = vpop.f32.mrb[0].mxu0
        %v768 = vadd.f32 0.0, %v767
        %v769 = vpop.f32.mrb[0].mxu0
        %770 = vdwg.mxu0
        %v771 = vxor.u32 %v768, 2147483648
        %v772 = vmul.f32 %v771, 1.442695
        %v773 = vpow.pop %v772
        %v774 = vadd.f32 %v773, 1.0
        %v775 = vrcp.pop %v774
        %v776 = vmul.f32 1.0, %v775
        %778 = vset.pattern.permute.xlu0 0
        %779 = vperm.xlu0 %778, %v776
        %v780 = vpop.permute.xlu0 %779
        %v782 = vmul.f32 %v691, %v780
        %v783 = vmul.f32 %v692, %v780
        %784 = vst [vmem:[%s240] sm:$0xff] %v782
        %785 = vst [vmem:[%s240 + $0x8] sm:$0xff] %v783
        %s786 = sand.u32 %s140, 1
        %s787 = scalar_lea.sflag [#allocation4], %s786
        %s788 = sand.u32 %s140, 1
        %s789 = smul.addr %s788, 16
        %s790 = scalar_lea.vmem [#allocation5], %s789
        // Predicated region
        $region45: #{tpu_custom_call.1} parent=39 // pred_check
          %p791 = pneg %p150
        $region46: #{tpu_custom_call.1} parent=39 // pred_check_branch
          %793 = sbr.rel (%p791) target = $region48
        $region47: #{tpu_custom_call.1} parent=39 // pred_region
          %s795 = ssub.s32 256, 256
          %796 = vsyncadd %s787, %s795
          %s797 = smul.addr %s22, 2
          %s798 = smul.addr %s797, 128
          %s799 = scalar_lea.hbm %s5, %s798
          %s801 = sshll.u32 %s790, 4
          %s802 = int_to_ptr.vmem [resolvable:$true] %s801
          %804 = dma.vmem_to_hbm [thread:$0]  %s802, 256, %s799, %s787
        $region48: #{tpu_custom_call.1} parent=39 // pred_fallthru
          _
      $region40: #{tpu_custom_call.1} parent=5 // pred_fallthru
        _
      %p805 = scmp.le.s32.totalorder 2, %s17
      // Predicated region
      $region49: #{tpu_custom_call.1} parent=5 // pred_check
        %p806 = pneg %p805
      $region50: #{tpu_custom_call.1} parent=5 // pred_check_branch
        %808 = sbr.rel (%p806) target = $region52
      $region51: #{tpu_custom_call.1} parent=5 // pred_region
        %s809 = ssub.s32 %s17, 2
        // Predicated region
        $region53: #{tpu_custom_call.1} parent=51 // pred_check
          %p810 = pneg %p156
        $region54: #{tpu_custom_call.1} parent=51 // pred_check_branch
          %812 = sbr.rel (%p810) target = $region56
        $region55: #{tpu_custom_call.1} parent=51 // pred_region
          %s813 = sand.u32 %s141, 1
          %s814 = scalar_lea.sflag [#allocation4], %s813
          %s815 = sand.u32 %s141, 1
          %s816 = smul.addr %s815, 16
          %s817 = scalar_lea.vmem [#allocation5], %s816
          %818 = dma.done %s814, 256
        $region56: #{tpu_custom_call.1} parent=51 // pred_fallthru
          _
      $region52: #{tpu_custom_call.1} parent=5 // pred_fallthru
        _
    $region6: #{tpu_custom_call.1} parent=1 // loop_footer
      %s21 = sadd.s32 1, %s17
    $region7: #{tpu_custom_call.1} parent=1 // loop_footer_branch
      %16 = sbr.rel target = $region3
    $region8: #{tpu_custom_call.1} parent=1 // loop_exit
      _
    %819 = vsyncpa [#allocation3], 1
    %s820 = scalar_lea.sflag [#allocation3], 1
    %821 = vsyncpa %s820, 1
    %822 = vsyncpa [#allocation4], 1
    %s823 = scalar_lea.sflag [#allocation4], 1
    %824 = vsyncpa %s823, 1

</llo_original>
